<compile_context>
chip_gen: v7x
topology: tpu7x:2x2x1
jax: 0.10.0
libtpu: 0.0.40
codegen_flags: <defaults>
</compile_context>

<pallas_src>
import functools

import jax
import jax.numpy as jnp
from jax.experimental import pallas as pl
from jax.experimental.pallas import tpu as pltpu

FP16_MAX = 65504.0   # torch.finfo(torch.float16).max
FP16_MIN = -65504.0  # torch.finfo(torch.float16).min
LN_EPS = 1e-5        # nn.LayerNorm default eps


def prenorm_kernel(x_ref, gamma_ref, beta_ref, w_ref, b_ref, o_ref, y_ref, *, inv_d):
    # x_ref: (tm, D) rows          gamma/beta: (1, D) f32
    # w_ref: (D, tn) bf16          b_ref: (1, tn) f32
    # o_ref: (tm, tn)              y_ref: (tm, D) bf16 scratch (normalized rows)
    j = pl.program_id(1)

    # Clamp + LayerNorm computed once per row tile (j == 0), cached in bf16
    # scratch and reused across all N tiles.
    # NOTE: this reuse relies on axis 1 (j) being the innermost, serially
    # iterated ("arbitrary") grid axis and on scratch persisting across grid
    # steps; do not reorder the grid or mark j "parallel".
    @pl.when(j == 0)
    def _():
        x = x_ref[...].astype(jnp.float32)
        x = jnp.clip(x, FP16_MIN, FP16_MAX)             # torch.clamp(fp16 range)
        s1 = jnp.sum(x, axis=-1, keepdims=True)         # fused single-pass stats
        s2 = jnp.sum(x * x, axis=-1, keepdims=True)
        mean = s1 * inv_d
        var = jnp.maximum(s2 * inv_d - mean * mean, 0.0)  # biased var (nn.LayerNorm)
        xhat = (x - mean) * jax.lax.rsqrt(var + LN_EPS)
        y_ref[...] = (xhat * gamma_ref[...] + beta_ref[...]).astype(jnp.bfloat16)

    # fn = Linear(D, D): bf16 MXU matmul, f32 accumulation.
    out = jnp.dot(y_ref[...], w_ref[...], preferred_element_type=jnp.float32)
    o_ref[...] = (out + b_ref[...]).astype(o_ref.dtype)


def _round_up(a, b):
    return ((a + b - 1) // b) * b


def _physical_vmem_bytes():
    try:
        return int(pltpu.get_tpu_info().vmem_capacity_bytes)
    except Exception:
        return 64 * 1024 * 1024  # conservative: v7x per-TC VMEM


def _vmem_need_bytes(tm, tn, d_in, x_itemsize, out_itemsize):
    # Auto-pipelining double-buffers every BlockSpec'd operand.
    x_buf = 2 * tm * d_in * x_itemsize        # input row tiles
    w_buf = 2 * d_in * tn * 2                 # bf16 weight tiles
    o_buf = 2 * tm * tn * out_itemsize        # output tiles
    y_scr = tm * d_in * 2                     # bf16 normalized-row scratch
    gb = 2 * 2 * d_in * 4                     # gamma + beta (f32)
    bias = 2 * tn * 4
    return x_buf + w_buf + o_buf + y_scr + gb + bias


def _pick_tm(M, cap):
    """Largest 8-aligned row tile <= cap with <=12.5% padding waste."""
    tm = min(cap, _round_up(max(M, 1), 8))
    tm = _round_up(tm, 8)
    while tm > 8:
        waste = _round_up(M, tm) - M
        if waste * 8 <= M:
            break
        tm -= 8
    # Keep >= 2 row tiles when possible so megacore ("parallel" i) has work
    # for both TensorCores.
    if M > 8 and _round_up(M, tm) // tm < 2:
        tm = max(8, _round_up(tm // 2, 8))
    return tm


def _pick_tn(d_in, n_pad, tm, x_itemsize, out_itemsize, budget):
    """N tile: prefer a fully VMEM-resident W (streams W from HBM exactly once);
    otherwise the largest 128-aligned divisor of n_pad (preferring multiples of
    256 for full MXU width on v6e/v7x) that fits the VMEM budget."""
    candidates = [n_pad]
    for c in (2048, 1536, 1024, 768, 512, 256, 384, 128):
        if c < n_pad and n_pad % c == 0:
            candidates.append(c)
    for tn in candidates:
        if _vmem_need_bytes(tm, tn, d_in, x_itemsize, out_itemsize) <= budget:
            return tn
    return candidates[-1]


@jax.jit
def prenorm_forward(x, gamma, beta, w, b):
    B, S, D = x.shape
    M = B * S
    x_itemsize = jnp.dtype(x.dtype).itemsize
    out_itemsize = x_itemsize

    phys_vmem = _physical_vmem_bytes()
    budget = (phys_vmem * 3) // 4             # ~48 MiB on v7x, ~96 MiB on v5e/v6e

    # Row tile: generation-aware cap (bigger on 128 MiB-VMEM parts), padding-aware.
    tm_cap = 512 if phys_vmem >= 96 * 1024 * 1024 else 256
    tm = _pick_tm(M, tm_cap)
    M_pad = _round_up(M, tm)

    # Pad the *output* dim of W / bias / out to a multiple of 128 (lane-dense
    # stores); the LN / contraction dim stays exactly D.
    N_pad = _round_up(D, 128)
    tn = _pick_tn(D, N_pad, tm, x_itemsize, out_itemsize, budget)

    need = _vmem_need_bytes(tm, tn, D, x_itemsize, out_itemsize)
    vmem_limit = int(min(budget, max(32 << 20, _round_up(need + (4 << 20), 1 << 20))))

    x2 = x.reshape(M, D)
    if M_pad != M:
        x2 = jnp.pad(x2, ((0, M_pad - M), (0, 0)))

    # Hoist casts / pads out of the grid loop: done once, outside the kernel.
    gamma2 = gamma.reshape(1, D).astype(jnp.float32)
    beta2 = beta.reshape(1, D).astype(jnp.float32)
    w_bf16 = w.astype(jnp.bfloat16)
    b2 = b.reshape(1, D).astype(jnp.float32)
    if N_pad != D:
        w_bf16 = jnp.pad(w_bf16, ((0, 0), (0, N_pad - D)))
        b2 = jnp.pad(b2, ((0, 0), (0, N_pad - D)))

    grid = (M_pad // tm, N_pad // tn)
    kernel = functools.partial(prenorm_kernel, inv_d=1.0 / D)

    out2 = pl.pallas_call(
        kernel,
        out_shape=jax.ShapeDtypeStruct((M_pad, N_pad), x.dtype),
        grid_spec=pltpu.PrefetchScalarGridSpec(
            num_scalar_prefetch=0,
            grid=grid,
            in_specs=[
                pl.BlockSpec((tm, D), lambda i, j: (i, 0)),   # x rows
                pl.BlockSpec((1, D), lambda i, j: (0, 0)),    # gamma
                pl.BlockSpec((1, D), lambda i, j: (0, 0)),    # beta
                pl.BlockSpec((D, tn), lambda i, j: (0, j)),   # W column tile (bf16)
                pl.BlockSpec((1, tn), lambda i, j: (0, j)),   # bias tile
            ],
            out_specs=pl.BlockSpec((tm, tn), lambda i, j: (i, j)),
            scratch_shapes=[pltpu.VMEM((tm, D), jnp.bfloat16)],
        ),
        compiler_params=pltpu.CompilerParams(
            dimension_semantics=("parallel", "arbitrary"),
            vmem_limit_bytes=vmem_limit,
        ),
    )(x2, gamma2, beta2, w_bf16, b2)

    return out2[:M, :D].reshape(B, S, D)


def prenorm_reference(x, gamma, beta, w, b):
    xf = jnp.clip(x.astype(jnp.float32), FP16_MIN, FP16_MAX)
    mean = jnp.mean(xf, axis=-1, keepdims=True)
    var = jnp.mean((xf - mean) ** 2, axis=-1, keepdims=True)
    xhat = (xf - mean) * jax.lax.rsqrt(var + LN_EPS)
    y = xhat * gamma + beta
    out = jnp.dot(y.astype(jnp.bfloat16), w.astype(jnp.bfloat16),
                  preferred_element_type=jnp.float32) + b
    return out.astype(x.dtype)


if __name__ == "__main__":
    # Small demo shapes; D = 128 keeps the output lane-dense (full vst stores).
    B, S, D = 2, 8, 128
    key = jax.random.PRNGKey(0)
    kx, kg, kb, kw, kbi = jax.random.split(key, 5)

    x = jax.random.normal(kx, (B, S, D), dtype=jnp.float32) * 3.0
    # LayerNorm params (PyTorch init weight=1, bias=0; perturbed deterministically).
    gamma = jnp.ones((D,), jnp.float32) + 0.1 * jax.random.normal(kg, (D,), jnp.float32)
    beta = 0.1 * jax.random.normal(kb, (D,), jnp.float32)
    # TODO(synk): `fn` is an arbitrary nn.Module in the spec; instantiated here as Linear(D, D).
    w = jax.random.normal(kw, (D, D), dtype=jnp.float32) * (1.0 / jnp.sqrt(D))
    b = 0.1 * jax.random.normal(kbi, (D,), jnp.float32)

    out = prenorm_forward(x, gamma, beta, w, b)
    jax.block_until_ready(out)

    ref = prenorm_reference(x, gamma, beta, w, b)
    assert out.shape == (B, S, D)
    # bf16 MXU operands => slightly looser tolerance vs the bf16-matmul reference.
    assert jnp.allclose(out, ref, atol=1e-2, rtol=1e-2), "mismatch vs reference"

    print("KERNEL_OK")
</pallas_src>

<mosaic_0001>
module attributes {stable_mosaic.version = 11 : i64} {
  func.func @prenorm_kernel(%arg0: i32, %arg1: i32, %arg2: memref<8x128xf32, #tpu.memory_space<vmem>>, %arg3: memref<1x128xf32, #tpu.memory_space<vmem>>, %arg4: memref<1x128xf32, #tpu.memory_space<vmem>>, %arg5: memref<128x128xbf16, #tpu.memory_space<vmem>>, %arg6: memref<1x128xf32, #tpu.memory_space<vmem>>, %arg7: memref<8x128xf32, #tpu.memory_space<vmem>>, %arg8: memref<8x128xbf16, #tpu.memory_space<vmem>>) attributes {dimension_semantics = [#tpu.dimension_semantics<parallel>, #tpu.dimension_semantics<arbitrary>], iteration_bounds = array<i64: 2, 1>, scalar_prefetch = 0 : i64, scratch_operands = 1 : i64, tpu.core_type = #tpu.core_type<tc>, window_params = [{transform_indices = @transform_0, window_bounds = array<i64: 8, 128>}, {pipeline_mode = #tpu.pipeline_mode<synchronous>, transform_indices = @transform_1, window_bounds = array<i64: 1, 128>}, {pipeline_mode = #tpu.pipeline_mode<synchronous>, transform_indices = @transform_2, window_bounds = array<i64: 1, 128>}, {transform_indices = @transform_3, window_bounds = array<i64: 128, 128>}, {transform_indices = @transform_4, window_bounds = array<i64: 1, 128>}, {transform_indices = @transform_5, window_bounds = array<i64: 8, 128>}]} {
    %c0_i32 = arith.constant 0 : i32
    %0 = arith.cmpi eq, %arg1, %c0_i32 : i32
    %1 = arith.extui %0 : i1 to i32
    %c0_i32_0 = arith.constant 0 : i32
    %2 = arith.cmpi ne, %1, %c0_i32_0 : i32
    scf.if %2 {
      %c0_8 = arith.constant 0 : index
      %c0_9 = arith.constant 0 : index
      %10 = vector.load %arg2[%c0_8, %c0_9] : memref<8x128xf32, #tpu.memory_space<vmem>>, vector<8x128xf32>
      %cst_10 = arith.constant -6.550400e+04 : f32
      %cst_11 = arith.constant 6.550400e+04 : f32
      %11 = vector.broadcast %cst_10 : f32 to vector<8x128xf32>
      %12 = arith.maximumf %11, %10 : vector<8x128xf32>
      %13 = vector.broadcast %cst_11 : f32 to vector<8x128xf32>
      %14 = arith.minimumf %13, %12 : vector<8x128xf32>
      %cst_12 = arith.constant dense<0.000000e+00> : vector<8xf32>
      %15 = vector.multi_reduction <add>, %14, %cst_12 [1] : vector<8x128xf32> to vector<8xf32>
      %16 = vector.shape_cast %15 : vector<8xf32> to vector<8x1xf32>
      %17 = arith.mulf %14, %14 : vector<8x128xf32>
      %cst_13 = arith.constant dense<0.000000e+00> : vector<8xf32>
      %18 = vector.multi_reduction <add>, %17, %cst_13 [1] : vector<8x128xf32> to vector<8xf32>
      %19 = vector.shape_cast %18 : vector<8xf32> to vector<8x1xf32>
      %cst_14 = arith.constant 7.812500e-03 : f32
      %20 = vector.broadcast %cst_14 : f32 to vector<8x1xf32>
      %21 = arith.mulf %16, %20 : vector<8x1xf32>
      %cst_15 = arith.constant 7.812500e-03 : f32
      %22 = vector.broadcast %cst_15 : f32 to vector<8x1xf32>
      %23 = arith.mulf %19, %22 : vector<8x1xf32>
      %24 = arith.mulf %21, %21 : vector<8x1xf32>
      %25 = arith.subf %23, %24 : vector<8x1xf32>
      %cst_16 = arith.constant 0.000000e+00 : f32
      %26 = vector.broadcast %cst_16 : f32 to vector<8x1xf32>
      %27 = arith.maximumf %25, %26 : vector<8x1xf32>
      %28 = vector.broadcast %21 : vector<8x1xf32> to vector<8x128xf32>
      %29 = arith.subf %14, %28 : vector<8x128xf32>
      %cst_17 = arith.constant 9.99999974E-6 : f32
      %30 = vector.broadcast %cst_17 : f32 to vector<8x1xf32>
      %31 = arith.addf %27, %30 : vector<8x1xf32>
      %32 = math.rsqrt %31 : vector<8x1xf32>
      %33 = vector.broadcast %32 : vector<8x1xf32> to vector<8x128xf32>
      %34 = arith.mulf %29, %33 : vector<8x128xf32>
      %c0_18 = arith.constant 0 : index
      %c0_19 = arith.constant 0 : index
      %35 = vector.load %arg3[%c0_18, %c0_19] : memref<1x128xf32, #tpu.memory_space<vmem>>, vector<1x128xf32>
      %36 = vector.broadcast %35 : vector<1x128xf32> to vector<8x128xf32>
      %37 = arith.mulf %34, %36 : vector<8x128xf32>
      %c0_20 = arith.constant 0 : index
      %c0_21 = arith.constant 0 : index
      %38 = vector.load %arg4[%c0_20, %c0_21] : memref<1x128xf32, #tpu.memory_space<vmem>>, vector<1x128xf32>
      %39 = vector.broadcast %38 : vector<1x128xf32> to vector<8x128xf32>
      %40 = arith.addf %37, %39 : vector<8x128xf32>
      %41 = arith.truncf %40 : vector<8x128xf32> to vector<8x128xbf16>
      %c0_22 = arith.constant 0 : index
      %c0_23 = arith.constant 0 : index
      %42 = vector.load %arg8[%c0_22, %c0_23] : memref<8x128xbf16, #tpu.memory_space<vmem>>, vector<8x128xbf16>
      tpu.vector_store %arg8[%c0_22, %c0_23], %41 {strides = array<i32>} : memref<8x128xbf16, #tpu.memory_space<vmem>>, vector<8x128xbf16>,
    } else {
    }
    %c0 = arith.constant 0 : index
    %c0_1 = arith.constant 0 : index
    %3 = vector.load %arg8[%c0, %c0_1] : memref<8x128xbf16, #tpu.memory_space<vmem>>, vector<8x128xbf16>
    %c0_2 = arith.constant 0 : index
    %c0_3 = arith.constant 0 : index
    %4 = vector.load %arg5[%c0_2, %c0_3] : memref<128x128xbf16, #tpu.memory_space<vmem>>, vector<128x128xbf16>
    %cst = arith.constant dense<0.000000e+00> : vector<8x128xf32>
    %5 = tpu.matmul %3, %4, %cst {dimension_numbers = #tpu.dot_dimension_numbers<[1], [0], [0], [1], [0, 0, 1, 1], [], []>} : vector<8x128xbf16>, vector<128x128xbf16>, vector<8x128xf32> -> vector<8x128xf32>
    %c0_4 = arith.constant 0 : index
    %c0_5 = arith.constant 0 : index
    %6 = vector.load %arg6[%c0_4, %c0_5] : memref<1x128xf32, #tpu.memory_space<vmem>>, vector<1x128xf32>
    %7 = vector.broadcast %6 : vector<1x128xf32> to vector<8x128xf32>
    %8 = arith.addf %5, %7 : vector<8x128xf32>
    %c0_6 = arith.constant 0 : index
    %c0_7 = arith.constant 0 : index
    %9 = vector.load %arg7[%c0_6, %c0_7] : memref<8x128xf32, #tpu.memory_space<vmem>>, vector<8x128xf32>
    tpu.vector_store %arg7[%c0_6, %c0_7], %8 {strides = array<i32>} : memref<8x128xf32, #tpu.memory_space<vmem>>, vector<8x128xf32>,
    return
  }
  func.func @transform_0(%arg0: i32, %arg1: i32) -> (i32, i32) {
    %c0_i32 = arith.constant 0 : i32
    %c0_i32_0 = arith.constant 0 : i32
    return %arg0, %c0_i32 : i32, i32
  }
  func.func @transform_1(%arg0: i32, %arg1: i32) -> (i32, i32) {
    %c0_i32 = arith.constant 0 : i32
    %c0_i32_0 = arith.constant 0 : i32
    %c0_i32_1 = arith.constant 0 : i32
    return %c0_i32, %c0_i32_0 : i32, i32
  }
  func.func @transform_2(%arg0: i32, %arg1: i32) -> (i32, i32) {
    %c0_i32 = arith.constant 0 : i32
    %c0_i32_0 = arith.constant 0 : i32
    %c0_i32_1 = arith.constant 0 : i32
    return %c0_i32, %c0_i32_0 : i32, i32
  }
  func.func @transform_3(%arg0: i32, %arg1: i32) -> (i32, i32) {
    %c0_i32 = arith.constant 0 : i32
    %c0_i32_0 = arith.constant 0 : i32
    return %c0_i32, %arg1 : i32, i32
  }
  func.func @transform_4(%arg0: i32, %arg1: i32) -> (i32, i32) {
    %c0_i32 = arith.constant 0 : i32
    %c0_i32_0 = arith.constant 0 : i32
    return %c0_i32, %arg1 : i32, i32
  }
  func.func @transform_5(%arg0: i32, %arg1: i32) -> (i32, i32) {
    %c0_i32 = arith.constant 0 : i32
    return %arg0, %arg1 : i32, i32
  }
}

</mosaic_0001>

<llo_original>
// kernel: prenorm_forward.1
$region0: #{prenorm_forward.1}
  #allocation0 [shape = 'u32[]', space=smem, size = 0x4, offset = 0x4, fixed_abs, tag = 'smem constant byte address 0x4 - core index']
  #allocation1 [shape = 'u32[144,128]{1,0:T(1,128)}', space=vmem, size = 0x12000, scoped, tag = 'internal scratch']
  #allocation2 [shape = 'bf16[8,128]{1,0:T(8,128)(2,1)}', space=vmem, size = 0x800, scoped, tag = 'scratch operand']
  %s0 = inlined_call_operand.vmem [shape: f32[16,128], index: 0, kind: input, shape index: {}]
  %s1 = inlined_call_operand.vmem [shape: f32[1,128], index: 1, kind: input, shape index: {}]
  %s2 = inlined_call_operand.vmem [shape: f32[1,128], index: 2, kind: input, shape index: {}]
  %s3 = inlined_call_operand.vmem [shape: bf16[128,128], index: 3, kind: input, shape index: {}]
  %s4 = inlined_call_operand.vmem [shape: f32[1,128], index: 4, kind: input, shape index: {}]
  %s5 = inlined_call_operand.hbm [shape: f32[16,128], index: 5, kind: output, shape index: {}]
  %s6 = sld [smem:[#allocation0]]
  $region57: #{prenorm_forward.1} parent=0
    _
  %s8 = ssub.s32 1, %s6
  %s9 = scalar_select 0, %s8, %s6
  $region1: #{prenorm_forward.1} parent=0
    #allocation3 [shape = 'u8[8192]{0}', space=vmem, size = 0x2000, scoped, tag = 'output window, operand 0']
    #allocation4 [shape = 's32[2]{0}', space=sflag, size = 0x8, scoped, tag = 'scoped memory for prenorm_forward.1']
    %10 = vsyncpa [#allocation4], 0
    %s11 = scalar_lea.sflag [#allocation4], 1
    %12 = vsyncpa %s11, 0
    loop: start=0, step=1, limit=4
    $region2: #{prenorm_forward.1} parent=1 // loop_pre_header
      _
    $region3: #{prenorm_forward.1} parent=1 // loop_header
      %s14 = sphi 0, %s18
      %p15 = scmp.ge.s32.totalorder %s14, 4
      %s21 = sphi 0, %s33
      %s22 = sphi 0, %s29
      %s23 = sphi 0, %s21
      %s24 = sphi 0, %s22
      %s25 = sphi 0, %s23
      %s26 = sphi 0, %s24
      %s36 = sphi 0, %s38
      %s39 = sphi 0, %s36
      %s40 = sphi 0, %s39
      %s56 = sphi 0, %s40
      %s60 = sphi 0, %s60
      %s62 = sphi 0, %s60
      %s63 = sphi 0, %s62
      %s77 = sphi 0, %s63
      %s81 = sphi 0, %s81
      %s83 = sphi 0, %s81
      %s84 = sphi 0, %s83
      %s98 = sphi 0, %s84
      %s104 = sphi 0, %s106
      %s107 = sphi 0, %s104
      %s108 = sphi 0, %s107
      %s124 = sphi 0, %s108
      %s130 = sphi 0, %s132
      %s133 = sphi 0, %s130
      %s134 = sphi 0, %s133
      %s150 = sphi 0, %s134
      %s158 = sphi 0, %s160
      %s161 = sphi 0, %s158
      %s162 = sphi 0, %s161
      %s178 = sphi 0, %s162
    $region4: #{prenorm_forward.1} parent=1 // loop_header_branch
      %17 = sbr.rel (%p15) target = $region8
    $region5: #{prenorm_forward.1} parent=1 // loop_body
      %s19 = ssub.s32 %s14, 1
      %s20 = ssub.s32 %s14, 2
      %s27 = sadd.s32 1, %s22
      %p28 = scmp.ge.s32.totalorder %s27, 1
      %s29 = scalar_select %p28, 0, %s27
      %s30 = sadd.s32 1, %s21
      %s31 = scalar_select %p28, %s30, %s21
      %p32 = scmp.ge.s32.totalorder %s31, 2
      %s33 = scalar_select %p32, 0, %s31
      %s34 = ssub.s32 %s21, %s33
      %p35 = scmp.eq.s32.totalorder %s34, 0
      %s37 = sadd.s32 %s36, 1
      %s38 = scalar_select %p35, %s36, %s37
      %p41 = pneg %p35
      %p42 = scmp.eq.s32.totalorder %s14, 1
      %p43 = por %p41, %p42
      %p44 = scmp.ne.s32.totalorder %s36, %s39
      %p45 = scmp.eq.s32.totalorder %s14, 0
      %p46 = por %p44, %p45
      %p47 = scmp.ne.s32.totalorder %s36, %s39
      %p48 = scmp.eq.s32.totalorder %s19, 1
      %p49 = por %p47, %p48
      %p50 = scmp.ne.s32.totalorder %s39, %s40
      %p51 = scmp.eq.s32.totalorder %s19, 0
      %p52 = por %p50, %p51
      %p53 = scmp.ne.s32.totalorder %s39, %s40
      %p54 = scmp.eq.s32.totalorder %s20, 1
      %p55 = por %p53, %p54
      %p57 = scmp.ne.s32.totalorder %s40, %s56
      %p58 = scmp.eq.s32.totalorder %s20, 0
      %p59 = por %p57, %p58
      %s61 = sadd.s32 %s60, 1
      %p64 = scmp.eq.s32.totalorder %s14, 1
      %p65 = scmp.ne.s32.totalorder %s60, %s62
      %p66 = scmp.eq.s32.totalorder %s14, 0
      %p67 = por %p65, %p66
      %p68 = scmp.ne.s32.totalorder %s60, %s62
      %p69 = scmp.eq.s32.totalorder %s19, 1
      %p70 = por %p68, %p69
      %p71 = scmp.ne.s32.totalorder %s62, %s63
      %p72 = scmp.eq.s32.totalorder %s19, 0
      %p73 = por %p71, %p72
      %p74 = scmp.ne.s32.totalorder %s62, %s63
      %p75 = scmp.eq.s32.totalorder %s20, 1
      %p76 = por %p74, %p75
      %p78 = scmp.ne.s32.totalorder %s63, %s77
      %p79 = scmp.eq.s32.totalorder %s20, 0
      %p80 = por %p78, %p79
      %s82 = sadd.s32 %s81, 1
      %p85 = scmp.eq.s32.totalorder %s14, 1
      %p86 = scmp.ne.s32.totalorder %s81, %s83
      %p87 = scmp.eq.s32.totalorder %s14, 0
      %p88 = por %p86, %p87
      %p89 = scmp.ne.s32.totalorder %s81, %s83
      %p90 = scmp.eq.s32.totalorder %s19, 1
      %p91 = por %p89, %p90
      %p92 = scmp.ne.s32.totalorder %s83, %s84
      %p93 = scmp.eq.s32.totalorder %s19, 0
      %p94 = por %p92, %p93
      %p95 = scmp.ne.s32.totalorder %s83, %s84
      %p96 = scmp.eq.s32.totalorder %s20, 1
      %p97 = por %p95, %p96
      %p99 = scmp.ne.s32.totalorder %s84, %s98
      %p100 = scmp.eq.s32.totalorder %s20, 0
      %p101 = por %p99, %p100
      %s102 = ssub.s32 %s22, %s29
      %p103 = scmp.eq.s32.totalorder %s102, 0
      %s105 = sadd.s32 %s104, 1
      %s106 = scalar_select %p103, %s104, %s105
      %p109 = pneg %p103
      %p110 = scmp.eq.s32.totalorder %s14, 1
      %p111 = por %p109, %p110
      %p112 = scmp.ne.s32.totalorder %s104, %s107
      %p113 = scmp.eq.s32.totalorder %s14, 0
      %p114 = por %p112, %p113
      %p115 = scmp.ne.s32.totalorder %s104, %s107
      %p116 = scmp.eq.s32.totalorder %s19, 1
      %p117 = por %p115, %p116
      %p118 = scmp.ne.s32.totalorder %s107, %s108
      %p119 = scmp.eq.s32.totalorder %s19, 0
      %p120 = por %p118, %p119
      %p121 = scmp.ne.s32.totalorder %s107, %s108
      %p122 = scmp.eq.s32.totalorder %s20, 1
      %p123 = por %p121, %p122
      %p125 = scmp.ne.s32.totalorder %s108, %s124
      %p126 = scmp.eq.s32.totalorder %s20, 0
      %p127 = por %p125, %p126
      %s128 = ssub.s32 %s22, %s29
      %p129 = scmp.eq.s32.totalorder %s128, 0
      %s131 = sadd.s32 %s130, 1
      %s132 = scalar_select %p129, %s130, %s131
      %p135 = pneg %p129
      %p136 = scmp.eq.s32.totalorder %s14, 1
      %p137 = por %p135, %p136
      %p138 = scmp.ne.s32.totalorder %s130, %s133
      %p139 = scmp.eq.s32.totalorder %s14, 0
      %p140 = por %p138, %p139
      %p141 = scmp.ne.s32.totalorder %s130, %s133
      %p142 = scmp.eq.s32.totalorder %s19, 1
      %p143 = por %p141, %p142
      %p144 = scmp.ne.s32.totalorder %s133, %s134
      %p145 = scmp.eq.s32.totalorder %s19, 0
      %p146 = por %p144, %p145
      %p147 = scmp.ne.s32.totalorder %s133, %s134
      %p148 = scmp.eq.s32.totalorder %s20, 1
      %p149 = por %p147, %p148
      %p151 = scmp.ne.s32.totalorder %s134, %s150
      %p152 = scmp.eq.s32.totalorder %s20, 0
      %p153 = por %p151, %p152
      %s154 = ssub.s32 %s21, %s33
      %s155 = ssub.s32 %s22, %s29
      %s156 = sor.u32 %s154, %s155
      %p157 = scmp.eq.s32.totalorder %s156, 0
      %s159 = sadd.s32 %s158, 1
      %s160 = scalar_select %p157, %s158, %s159
      %p163 = pneg %p157
      %p164 = scmp.eq.s32.totalorder %s14, 1
      %p165 = por %p163, %p164
      %p166 = scmp.ne.s32.totalorder %s158, %s161
      %p167 = scmp.eq.s32.totalorder %s14, 0
      %p168 = por %p166, %p167
      %p169 = scmp.ne.s32.totalorder %s158, %s161
      %p170 = scmp.eq.s32.totalorder %s19, 1
      %p171 = por %p169, %p170
      %p172 = scmp.ne.s32.totalorder %s161, %s162
      %p173 = scmp.eq.s32.totalorder %s19, 0
      %p174 = por %p172, %p173
      %p175 = scmp.ne.s32.totalorder %s161, %s162
      %p176 = scmp.eq.s32.totalorder %s20, 1
      %p177 = por %p175, %p176
      %p179 = scmp.ne.s32.totalorder %s162, %s178
      %p180 = scmp.eq.s32.totalorder %s20, 0
      %p181 = por %p179, %p180
      %p182 = scmp.le.s32.totalorder 1, %s14
      %p183 = scmp.lt.s32.totalorder %s14, 3
      %p184 = pnand %p182, %p183
      %p185 = pneg %p184
      // Predicated region
      $region9: #{prenorm_forward.1} parent=5 // pred_check
        _
      $region10: #{prenorm_forward.1} parent=5 // pred_check_branch
        %187 = sbr.rel (%p184) target = $region12
      $region11: #{prenorm_forward.1} parent=5 // pred_region
        %s188 = ssub.s32 %s14, 1
        // Predicated region
        $region13: #{prenorm_forward.1} parent=11 // pred_check
          %p189 = pneg %p73
        $region14: #{prenorm_forward.1} parent=11 // pred_check_branch
          %191 = sbr.rel (%p189) target = $region16
        $region15: #{prenorm_forward.1} parent=11 // pred_region
          _
        $region16: #{prenorm_forward.1} parent=11 // pred_fallthru
          _
        // Predicated region
        $region17: #{prenorm_forward.1} parent=11 // pred_check
          %p192 = pneg %p94
        $region18: #{prenorm_forward.1} parent=11 // pred_check_branch
          %194 = sbr.rel (%p192) target = $region20
        $region19: #{prenorm_forward.1} parent=11 // pred_region
          _
        $region20: #{prenorm_forward.1} parent=11 // pred_fallthru
          _
        // Predicated region
        $region21: #{prenorm_forward.1} parent=11 // pred_check
          %p195 = pneg %p120
        $region22: #{prenorm_forward.1} parent=11 // pred_check_branch
          %197 = sbr.rel (%p195) target = $region24
        $region23: #{prenorm_forward.1} parent=11 // pred_region
          %p198 = scmp.lt.s32.totalorder %s24, 0
          %s199 = scalar_select %p198, %s24, 0
          %s200 = smul.addr %s199, 4
          %s201 = scalar_lea.vmem %s3, %s200
        $region24: #{prenorm_forward.1} parent=11 // pred_fallthru
          _
        // Predicated region
        $region25: #{prenorm_forward.1} parent=11 // pred_check
          %p202 = pneg %p146
        $region26: #{prenorm_forward.1} parent=11 // pred_check_branch
          %204 = sbr.rel (%p202) target = $region28
        $region27: #{prenorm_forward.1} parent=11 // pred_region
          %p205 = scmp.lt.s32.totalorder %s24, 0
          %s206 = scalar_select %p205, %s24, 0
          %s207 = scalar_lea.vmem %s4, %s206
        $region28: #{prenorm_forward.1} parent=11 // pred_fallthru
          _
      $region12: #{prenorm_forward.1} parent=5 // pred_fallthru
        _
      %p208 = scmp.lt.s32.totalorder %s14, 2
      // Predicated region
      $region29: #{prenorm_forward.1} parent=5 // pred_check
        %p209 = pneg %p208
      $region30: #{prenorm_forward.1} parent=5 // pred_check_branch
        %211 = sbr.rel (%p209) target = $region32
      $region31: #{prenorm_forward.1} parent=5 // pred_region
        // Predicated region
        $region33: #{prenorm_forward.1} parent=31 // pred_check
          %p212 = pneg %p46
        $region34: #{prenorm_forward.1} parent=31 // pred_check_branch
          %214 = sbr.rel (%p212) target = $region36
        $region35: #{prenorm_forward.1} parent=31 // pred_region
          %p215 = scmp.lt.s32.totalorder %s21, 1
          %s216 = scalar_select %p215, %s21, 1
          %s217 = smul.addr %s216, 8
          %s218 = scalar_lea.vmem %s0, %s217
        $region36: #{prenorm_forward.1} parent=31 // pred_fallthru
          _
      $region32: #{prenorm_forward.1} parent=5 // pred_fallthru
        _
      %p219 = scmp.le.s32.totalorder 1, %s14
      %p220 = scmp.lt.s32.totalorder %s14, 3
      %p221 = pnand %p219, %p220
      %p222 = pneg %p221
      // Predicated region
      $region37: #{prenorm_forward.1} parent=5 // pred_check
        _
      $region38: #{prenorm_forward.1} parent=5 // pred_check_branch
        %224 = sbr.rel (%p221) target = $region40
      $region39: #{prenorm_forward.1} parent=5 // pred_region
        %s225 = ssub.s32 %s14, 1
        %p226 = scmp.lt.s32.totalorder %s23, 1
        %s227 = scalar_select %p226, %s23, 1
        %s228 = smul.addr %s227, 8
        %s229 = scalar_lea.vmem %s0, %s228
        %p230 = pneg %p52
        %p231 = pneg %p49
        %p232 = pneg %p73
        %p233 = pneg %p70
        %p234 = pneg %p94
        %p235 = pneg %p91
        %p236 = scmp.lt.s32.totalorder %s24, 0
        %s237 = scalar_select %p236, %s24, 0
        %s238 = smul.addr %s237, 4
        %s239 = scalar_lea.vmem %s3, %s238
        %p240 = pneg %p120
        %p241 = pneg %p117
        %p242 = scmp.lt.s32.totalorder %s24, 0
        %s243 = scalar_select %p242, %s24, 0
        %s244 = scalar_lea.vmem %s4, %s243
        %p245 = pneg %p146
        %p246 = pneg %p143
        %p247 = pneg %p174
        %p248 = pneg %p171
        %s249 = sand.u32 %s161, 1
        %s250 = scalar_lea.sflag [#allocation4], %s249
        %s251 = sand.u32 %s161, 1
        %s252 = smul.addr %s251, 8
        %s253 = scalar_lea.vmem [#allocation3], %s252
        %p254 = scmp.lt.s32.totalorder %s23, 1
        %s255 = scalar_select %p254, %s23, 1
        %s256 = smul.addr %s255, 8
        %s257 = scalar_lea.vmem %s0, %s256
        %p258 = scmp.lt.s32.totalorder %s24, 0
        %s259 = scalar_select %p258, %s24, 0
        %s260 = smul.addr %s259, 4
        %s261 = scalar_lea.vmem %s3, %s260
        %p262 = scmp.lt.s32.totalorder %s24, 0
        %s263 = scalar_select %p262, %s24, 0
        %s264 = scalar_lea.vmem %s4, %s263
        %p266 = scmp.eq.s32.totalorder %s24, 0
        // Predicated region
        $region41: #{prenorm_forward.1} parent=39 // pred_check
          %p267 = pneg %p266
        $region42: #{prenorm_forward.1} parent=39 // pred_check_branch
          %269 = sbr.rel (%p267) target = $region44
        $region43: #{prenorm_forward.1} parent=39 // pred_region
          %v270 = vld [vmem:[%s257] sm:$0xff]
          %v271 = vmax.f32 %v270, -65504.0
          %v272 = vmin.f32 %v271, 65504.0
          %273 = vadd.xlane.f32.xlu0 %v272
          %v274 = vpop.xlane.xlu0 %273
          %v275 = vmul.f32 %v272, %v272
          %276 = vadd.xlane.f32.xlu0 %v275
          %v277 = vpop.xlane.xlu0 %276
          %v278 = vmul.f32 %v274, 0.0078125
          %v279 = vmul.f32 %v277, 0.0078125
          %v280 = vmul.f32 %v278, %v278
          %v281 = vsub.f32 %v279, %v280
          %v282 = vmax.f32 %v281, 0.0
          %v283 = vsub.f32 %v272, %v278
          %v284 = vadd.f32 %v282, 1e-05
          %v285 = vrsqrt.pop %v284
          %v286 = vmul.f32 %v283, %v285
          %v287 = vld [vmem:[%s1] sm:$0x1]
          %v289 = vlaneseq
          %v290 = vshrl.u32 %v289, 7
          %v291 = vsub.s32 0, %v290
          %v292 = vrot.slane %v287, %v291
          %v294 = vmul.f32 %v286, %v292
          %v295 = vld [vmem:[%s2] sm:$0x1]
          %v297 = vlaneseq
          %v298 = vshrl.u32 %v297, 7
          %v299 = vsub.s32 0, %v298
          %v300 = vrot.slane %v295, %v299
          %v302 = vadd.f32 %v294, %v300
          %v303 = vpack.c.bf16 %v302, %v302
          %304 = vst [vmem:[#allocation2] sm:$0xf] %v303
        $region44: #{prenorm_forward.1} parent=39 // pred_fallthru
          _
        %v305 = vld [vmem:[#allocation2] sm:$0xf]
        %v306 = vld [vmem:[%s261] sm:$0xf]
        %v307 = vld [vmem:[%s261 + $0x4] sm:$0xf]
        %v308 = vld [vmem:[%s261 + $0x8] sm:$0xf]
        %v309 = vld [vmem:[%s261 + $0xc] sm:$0xf]
        %v310 = vld [vmem:[%s261 + $0x10] sm:$0xf]
        %v311 = vld [vmem:[%s261 + $0x14] sm:$0xf]
        %v312 = vld [vmem:[%s261 + $0x18] sm:$0xf]
        %v313 = vld [vmem:[%s261 + $0x1c] sm:$0xf]
        %v314 = vld [vmem:[%s261 + $0x20] sm:$0xf]
        %v315 = vld [vmem:[%s261 + $0x24] sm:$0xf]
        %v316 = vld [vmem:[%s261 + $0x28] sm:$0xf]
        %v317 = vld [vmem:[%s261 + $0x2c] sm:$0xf]
        %v318 = vld [vmem:[%s261 + $0x30] sm:$0xf]
        %v319 = vld [vmem:[%s261 + $0x34] sm:$0xf]
        %v320 = vld [vmem:[%s261 + $0x38] sm:$0xf]
        %v321 = vld [vmem:[%s261 + $0x3c] sm:$0xf]
        %v322 = vld [vmem:[%s264] sm:$0x1]
        %v324 = vlaneseq
        %v325 = vshrl.u32 %v324, 7
        %v326 = vsub.s32 0, %v325
        %v327 = vrot.slane %v322, %v326
        %v345 = vunpack.c.l.b16 %v306
        %v346 = vunpack.c.l.b16 %v307
        %v347 = vunpack.c.l.b16 %v308
        %v348 = vunpack.c.l.b16 %v309
        %v349 = vunpack.c.l.b16 %v310
        %v350 = vunpack.c.l.b16 %v311
        %v351 = vunpack.c.l.b16 %v312
        %v352 = vunpack.c.l.b16 %v313
        %v353 = vunpack.c.l.b16 %v314
        %v354 = vunpack.c.l.b16 %v315
        %v355 = vunpack.c.l.b16 %v316
        %v356 = vunpack.c.l.b16 %v317
        %v357 = vunpack.c.l.b16 %v318
        %v358 = vunpack.c.l.b16 %v319
        %v359 = vunpack.c.l.b16 %v320
        %v360 = vunpack.c.l.b16 %v321
        %v361 = vpack.c.b16 %v346, %v345
        %v362 = vpack.c.b16 %v348, %v347
        %v363 = vpack.c.b16 %v350, %v349
        %v364 = vpack.c.b16 %v352, %v351
        %v365 = vpack.c.b16 %v354, %v353
        %v366 = vpack.c.b16 %v356, %v355
        %v367 = vpack.c.b16 %v358, %v357
        %v368 = vpack.c.b16 %v360, %v359
        %377 = vmatprep.subr.bf16.mxu0 0
        %378 = vmatpush1.bf16.msra.mxu0 %v361
        %379 = vmatprep.subr.bf16.mxu0 0
        %380 = vmatpush1.bf16.msra.mxu0 %v362
        %381 = vmatprep.subr.bf16.mxu0 0
        %382 = vmatpush1.bf16.msra.mxu0 %v363
        %383 = vmatprep.subr.bf16.mxu0 0
        %384 = vmatpush1.bf16.msra.mxu0 %v364
        %385 = vmatprep.subr.bf16.mxu0 0
        %386 = vmatpush1.bf16.msra.mxu0 %v365
        %387 = vmatprep.subr.bf16.mxu0 0
        %388 = vmatpush1.bf16.msra.mxu0 %v366
        %389 = vmatprep.subr.bf16.mxu0 0
        %390 = vmatpush1.bf16.msra.mxu0 %v367
        %391 = vmatprep.subr.bf16.mxu0 0
        %392 = vmatpush1.bf16.msra.mxu0 %v368
        %393 = vmatprep.subr.bf16.mxu0 0
        %394 = vmatpush1.bf16.msra.mxu0 0
        %395 = vmatprep.subr.bf16.mxu0 0
        %396 = vmatpush1.bf16.msra.mxu0 0
        %397 = vmatprep.subr.bf16.mxu0 0
        %398 = vmatpush1.bf16.msra.mxu0 0
        %399 = vmatprep.subr.bf16.mxu0 0
        %400 = vmatpush1.bf16.msra.mxu0 0
        %401 = vmatprep.subr.bf16.mxu0 0
        %402 = vmatpush1.bf16.msra.mxu0 0
        %403 = vmatprep.subr.bf16.mxu0 0
        %404 = vmatpush1.bf16.msra.mxu0 0
        %405 = vmatprep.subr.bf16.mxu0 0
        %406 = vmatpush1.bf16.msra.mxu0 0
        %407 = vmatprep.subr.bf16.mxu0 0
        %408 = vmatpush1.bf16.msra.mxu0 0
        %409 = vmatprep.mubr.bf16.mxu0 0
        %410 = vmatmul.mubr.bf16.gmra.mrb[0].mxu0 %v305
        %v411 = vpop.f32.mrb[0].mxu0
        %v412 = vadd.f32 %v327, %v411
        %v413 = vpop.f32.mrb[0].mxu0
        %v414 = vpop.f32.mrb[0].mxu0
        %v415 = vpop.f32.mrb[0].mxu0
        %416 = vdwg.mxu0
        %417 = vst [vmem:[%s253] sm:$0xff] %v412
        %s418 = sand.u32 %s161, 1
        %s419 = scalar_lea.sflag [#allocation4], %s418
        %s420 = sand.u32 %s161, 1
        %s421 = smul.addr %s420, 8
        %s422 = scalar_lea.vmem [#allocation3], %s421
        // Predicated region
        $region45: #{prenorm_forward.1} parent=39 // pred_check
          %p423 = pneg %p171
        $region46: #{prenorm_forward.1} parent=39 // pred_check_branch
          %425 = sbr.rel (%p423) target = $region48
        $region47: #{prenorm_forward.1} parent=39 // pred_region
          %s427 = ssub.s32 128, 128
          %428 = vsyncadd %s419, %s427
          %s429 = sadd.s32 %s24, %s23
          %s430 = smul.addr %s429, 128
          %s431 = scalar_lea.hbm %s5, %s430
          %s433 = sshll.u32 %s422, 4
          %s434 = int_to_ptr.vmem [resolvable:$true] %s433
          %436 = dma.vmem_to_hbm [thread:$0]  %s434, 128, %s431, %s419
        $region48: #{prenorm_forward.1} parent=39 // pred_fallthru
          _
      $region40: #{prenorm_forward.1} parent=5 // pred_fallthru
        _
      %p437 = scmp.le.s32.totalorder 2, %s14
      // Predicated region
      $region49: #{prenorm_forward.1} parent=5 // pred_check
        %p438 = pneg %p437
      $region50: #{prenorm_forward.1} parent=5 // pred_check_branch
        %440 = sbr.rel (%p438) target = $region52
      $region51: #{prenorm_forward.1} parent=5 // pred_region
        %s441 = ssub.s32 %s14, 2
        // Predicated region
        $region53: #{prenorm_forward.1} parent=51 // pred_check
          %p442 = pneg %p177
        $region54: #{prenorm_forward.1} parent=51 // pred_check_branch
          %444 = sbr.rel (%p442) target = $region56
        $region55: #{prenorm_forward.1} parent=51 // pred_region
          %s445 = sand.u32 %s162, 1
          %s446 = scalar_lea.sflag [#allocation4], %s445
          %s447 = sand.u32 %s162, 1
          %s448 = smul.addr %s447, 8
          %s449 = scalar_lea.vmem [#allocation3], %s448
          %450 = dma.done %s446, 128
        $region56: #{prenorm_forward.1} parent=51 // pred_fallthru
          _
      $region52: #{prenorm_forward.1} parent=5 // pred_fallthru
        _
    $region6: #{prenorm_forward.1} parent=1 // loop_footer
      %s18 = sadd.s32 1, %s14
    $region7: #{prenorm_forward.1} parent=1 // loop_footer_branch
      %13 = sbr.rel target = $region3
    $region8: #{prenorm_forward.1} parent=1 // loop_exit
      _
    %451 = vsyncpa [#allocation4], 1
    %s452 = scalar_lea.sflag [#allocation4], 1
    %453 = vsyncpa %s452, 1

</llo_original>
